<compile_context>
chip_gen: v6e
topology: v6e:2x2x1
jax: 0.10.0
libtpu: 0.0.40
codegen_flags: <defaults>
</compile_context>

<pallas_src>
import functools
from typing import NamedTuple

import jax
import jax.numpy as jnp
from jax.experimental import pallas as pl
from jax.experimental.pallas import tpu as pltpu

SUBLANE = 8
LANE = 128


def _round_up(v, m):
    return ((v + m - 1) // m) * m


class PreppedParams(NamedTuple):
    w_x: jax.Array    # (I_pad, H_pad)  == W_hx^T, zero-padded
    w_h: jax.Array    # (H_pad, H_pad)  == W_hh^T, zero-padded
    b_h: jax.Array    # (1, H_pad)      == b_hx + b_hh (f32), zero-padded
    w_ph: jax.Array   # (H_pad, O_pad)  == W_ph^T, zero-padded
    b_ph: jax.Array   # (1, O_pad)      (f32)


def prepare_params(params, *, weight_dtype=jnp.float32):
    """One-time weight prep (transpose / fuse-bias / pad) outside the hot path."""
    w_hx, b_hx, w_hh, b_hh, w_ph, b_ph = params
    hidden_dim, input_dim = w_hx.shape
    output_dim = w_ph.shape[0]
    i_pad = _round_up(input_dim, LANE)
    h_pad = _round_up(hidden_dim, LANE)
    o_pad = _round_up(output_dim, LANE)

    w_x = jnp.zeros((i_pad, h_pad), weight_dtype).at[:input_dim, :hidden_dim].set(
        w_hx.T.astype(weight_dtype))
    w_h = jnp.zeros((h_pad, h_pad), weight_dtype).at[:hidden_dim, :hidden_dim].set(
        w_hh.T.astype(weight_dtype))
    b_h = jnp.zeros((1, h_pad), jnp.float32).at[0, :hidden_dim].set(
        (b_hx + b_hh).astype(jnp.float32))
    w_ph_p = jnp.zeros((h_pad, o_pad), weight_dtype).at[:hidden_dim, :output_dim].set(
        w_ph.T.astype(weight_dtype))
    b_ph_p = jnp.zeros((1, o_pad), jnp.float32).at[0, :output_dim].set(
        b_ph.astype(jnp.float32))
    return PreppedParams(w_x, w_h, b_h, w_ph_p, b_ph_p)


def _rnn_chunk_kernel(x_ref, h0_ref, w_x_ref, w_h_ref, b_h_ref, w_ph_ref, b_ph_ref,
                      out_ref, h_out_ref, *, seq_len):
    """One grid step = T_BLK recurrent timesteps + one batched output projection."""
    t_blk, b_pad, _ = x_ref.shape
    h_pad = h0_ref.shape[1]
    o_pad = b_ph_ref.shape[1]
    c = pl.program_id(0)

    # The final-hidden output block (constant index_map -> VMEM resident) doubles
    # as the carried hidden state. Seed it from h0 on the first chunk only.
    @pl.when(c == 0)
    def _():
        h_out_ref[...] = h0_ref[...]

    # Hoisted out of the unrolled time loop: weight loads + bias broadcast.
    w_x = w_x_ref[...]
    w_h = w_h_ref[...]
    b_h = jnp.broadcast_to(b_h_ref[...], (b_pad, h_pad))
    has_tail = (seq_len % t_blk) != 0

    h = h_out_ref[...]
    hs = []
    for k in range(t_blk):  # statically unrolled inner time loop
        x_k = x_ref[k].astype(w_x.dtype)
        pre = (jnp.dot(x_k, w_x, preferred_element_type=jnp.float32)
               + jnp.dot(h.astype(w_h.dtype), w_h, preferred_element_type=jnp.float32)
               + b_h)
        h_new = jnp.tanh(pre)
        if has_tail:  # trace-time constant: only emit the mask if a ragged tail exists
            h_new = jnp.where(c * t_blk + k < seq_len, h_new, h)
        h = h_new
        hs.append(h)
    h_out_ref[...] = h  # one carried-state store per chunk, not per step

    # One batched output projection over all t_blk hidden states of this chunk.
    h_slab = jnp.concatenate(hs, axis=0) if t_blk > 1 else hs[0]  # (t_blk*b_pad, h_pad)
    proj = jnp.dot(h_slab.astype(w_ph_ref.dtype), w_ph_ref[...],
                   preferred_element_type=jnp.float32) + b_ph_ref[...]
    out_ref[...] = proj.reshape(t_blk, b_pad, o_pad).astype(out_ref.dtype)


@functools.partial(jax.jit, static_argnames=("output_dim", "t_blk"))
def vanilla_rnn_sequence(x_seq, hidden, prepped, *, output_dim, t_blk=8):
    """Run T RNN steps in one fused kernel. x_seq: (T, B, I); hidden: (B, H)."""
    T, B, I = x_seq.shape
    H = hidden.shape[1]
    b_pad = _round_up(B, SUBLANE)
    i_pad = prepped.w_x.shape[0]
    h_pad = prepped.w_h.shape[0]
    o_pad = prepped.w_ph.shape[1]

    t_blk = max(1, min(int(t_blk), T))
    n_chunks = pl.cdiv(T, t_blk)
    t_pad = n_chunks * t_blk

    # Zero-pad activations to lane-dense (8, 128)-aligned tiles, but only if needed
    # (avoid a full extra HBM read+write of the sequence when already aligned).
    if (t_pad, b_pad, i_pad) != (T, B, I):
        x_p = jnp.zeros((t_pad, b_pad, i_pad), jnp.float32).at[:T, :B, :I].set(x_seq)
    else:
        x_p = x_seq.astype(jnp.float32)
    if (b_pad, h_pad) != (B, H):
        h0_p = jnp.zeros((b_pad, h_pad), jnp.float32).at[:B, :H].set(hidden)
    else:
        h0_p = hidden.astype(jnp.float32)

    kernel = functools.partial(_rnn_chunk_kernel, seq_len=T)

    # Weights/biases use constant index_maps -> DMA'd once, VMEM-resident.
    # x / outputs stream one T_BLK chunk per grid step.
    # NOTE(v7x): for real hidden sizes, re-budget resident weights for 64 MiB VMEM
    # (bf16 weights via prepare_params(weight_dtype=jnp.bfloat16) halves them).
    grid_spec = pltpu.PrefetchScalarGridSpec(
        num_scalar_prefetch=0,
        grid=(n_chunks,),
        in_specs=[
            pl.BlockSpec((t_blk, b_pad, i_pad), lambda c: (c, 0, 0)),  # x chunk
            pl.BlockSpec((b_pad, h_pad), lambda c: (0, 0)),            # h0 (once)
            pl.BlockSpec((i_pad, h_pad), lambda c: (0, 0)),            # W_hx^T resident
            pl.BlockSpec((h_pad, h_pad), lambda c: (0, 0)),            # W_hh^T resident
            pl.BlockSpec((1, h_pad), lambda c: (0, 0)),                # fused bias
            pl.BlockSpec((h_pad, o_pad), lambda c: (0, 0)),            # W_ph^T resident
            pl.BlockSpec((1, o_pad), lambda c: (0, 0)),                # b_ph
        ],
        out_specs=(
            pl.BlockSpec((t_blk, b_pad, o_pad), lambda c: (c, 0, 0)),  # outputs streamed
            pl.BlockSpec((b_pad, h_pad), lambda c: (0, 0)),            # carried/final hidden
        ),
    )

    out_p, h_final_p = pl.pallas_call(
        kernel,
        out_shape=(
            jax.ShapeDtypeStruct((t_pad, b_pad, o_pad), jnp.float32),
            jax.ShapeDtypeStruct((b_pad, h_pad), jnp.float32),
        ),
        grid_spec=grid_spec,
        compiler_params=pltpu.CompilerParams(
            dimension_semantics=("arbitrary",)),  # time chunks carry a dependence
    )(x_p, h0_p, prepped.w_x, prepped.w_h, prepped.b_h, prepped.w_ph, prepped.b_ph)

    return out_p[:T, :B, :output_dim], h_final_p[:B, :H]


def vanilla_rnn_forward(x, hidden, prepped, *, output_dim):
    """Exact VanillaRNN.forward semantics: one step, returns (outputs, new_hidden)."""
    out_seq, h_new = vanilla_rnn_sequence(x[None], hidden, prepped,
                                          output_dim=output_dim, t_blk=1)
    return out_seq[0], h_new


def init_params(key, input_dim, hidden_dim, output_dim):
    """Deterministic init mirroring nn.Linear shapes: W (out, in), b (out,)."""
    ks = jax.random.split(key, 6)

    def lin(kw, kb, fan_in, fan_out):
        bound = 1.0 / jnp.sqrt(fan_in)
        w = jax.random.uniform(kw, (fan_out, fan_in), jnp.float32, -bound, bound)
        b = jax.random.uniform(kb, (fan_out,), jnp.float32, -bound, bound)
        return w, b

    w_hx, b_hx = lin(ks[0], ks[1], input_dim, hidden_dim)
    w_hh, b_hh = lin(ks[2], ks[3], hidden_dim, hidden_dim)
    w_ph, b_ph = lin(ks[4], ks[5], hidden_dim, output_dim)
    return (w_hx, b_hx, w_hh, b_hh, w_ph, b_ph)


if __name__ == "__main__":
    seq_length = 8
    input_dim = 16
    hidden_dim = 32
    output_dim = 10
    batch_size = 4

    key = jax.random.PRNGKey(0)
    k_x, k_xs, k_xs2, k_h, k_p = jax.random.split(key, 5)

    x = jax.random.normal(k_x, (batch_size, input_dim), jnp.float32)
    x_seq = jax.random.normal(k_xs, (seq_length, batch_size, input_dim), jnp.float32)
    x_seq_ragged = jax.random.normal(k_xs2, (11, batch_size, input_dim), jnp.float32)
    hidden = jax.random.normal(k_h, (batch_size, hidden_dim), jnp.float32)

    params = init_params(k_p, input_dim, hidden_dim, output_dim)
    prepped = prepare_params(params)  # weight_dtype=jnp.bfloat16 for v6e/v7x real sizes
    w_hx, b_hx, w_hh, b_hh, w_ph, b_ph = params

    def ref_seq(xs, h0):
        h = h0
        outs = []
        for t in range(xs.shape[0]):
            h = jnp.tanh(xs[t] @ w_hx.T + b_hx + h @ w_hh.T + b_hh)
            outs.append(h @ w_ph.T + b_ph)
        return jnp.stack(outs), h

    # --- single step: exact nn.Module forward semantics ---
    outputs, new_hidden = vanilla_rnn_forward(x, hidden, prepped,
                                              output_dim=output_dim)
    jax.block_until_ready((outputs, new_hidden))
    h_ref = jnp.tanh(x @ w_hx.T + b_hx + hidden @ w_hh.T + b_hh)
    o_ref = h_ref @ w_ph.T + b_ph
    assert jnp.allclose(new_hidden, h_ref, atol=1e-4, rtol=1e-4), "hidden mismatch"
    assert jnp.allclose(outputs, o_ref, atol=1e-4, rtol=1e-4), "output mismatch"

    # --- fused sequence: one chunk of 8 timesteps per grid step ---
    out_seq, h_T = vanilla_rnn_sequence(x_seq, hidden, prepped,
                                        output_dim=output_dim, t_blk=8)
    jax.block_until_ready((out_seq, h_T))
    outs_r, h_r = ref_seq(x_seq, hidden)
    assert jnp.allclose(h_T, h_r, atol=1e-4, rtol=1e-4), "seq hidden mismatch"
    assert jnp.allclose(out_seq, outs_r, atol=1e-4, rtol=1e-4), "seq output mismatch"

    # --- ragged length (T=11, T_BLK=4): multi-chunk + masked tail steps ---
    out_seq2, h_T2 = vanilla_rnn_sequence(x_seq_ragged, hidden, prepped,
                                          output_dim=output_dim, t_blk=4)
    jax.block_until_ready((out_seq2, h_T2))
    outs_r2, h_r2 = ref_seq(x_seq_ragged, hidden)
    assert jnp.allclose(h_T2, h_r2, atol=1e-4, rtol=1e-4), "ragged hidden mismatch"
    assert jnp.allclose(out_seq2, outs_r2, atol=1e-4, rtol=1e-4), "ragged output mismatch"

    print("KERNEL_OK")
</pallas_src>

<mosaic_0001>
module attributes {stable_mosaic.version = 11 : i64} {
  func.func @_rnn_chunk_kernel(%arg0: i32, %arg1: memref<1x8x128xf32, #tpu.memory_space<vmem>>, %arg2: memref<8x128xf32, #tpu.memory_space<vmem>>, %arg3: memref<128x128xf32, #tpu.memory_space<vmem>>, %arg4: memref<128x128xf32, #tpu.memory_space<vmem>>, %arg5: memref<1x128xf32, #tpu.memory_space<vmem>>, %arg6: memref<128x128xf32, #tpu.memory_space<vmem>>, %arg7: memref<1x128xf32, #tpu.memory_space<vmem>>, %arg8: memref<1x8x128xf32, #tpu.memory_space<vmem>>, %arg9: memref<8x128xf32, #tpu.memory_space<vmem>>) attributes {dimension_semantics = [#tpu.dimension_semantics<arbitrary>], iteration_bounds = array<i64: 1>, scalar_prefetch = 0 : i64, scratch_operands = 0 : i64, tpu.core_type = #tpu.core_type<tc>, window_params = [{transform_indices = @transform_0, window_bounds = array<i64: 1, 8, 128>}, {pipeline_mode = #tpu.pipeline_mode<synchronous>, transform_indices = @transform_1, window_bounds = array<i64: 8, 128>}, {pipeline_mode = #tpu.pipeline_mode<synchronous>, transform_indices = @transform_2, window_bounds = array<i64: 128, 128>}, {pipeline_mode = #tpu.pipeline_mode<synchronous>, transform_indices = @transform_3, window_bounds = array<i64: 128, 128>}, {pipeline_mode = #tpu.pipeline_mode<synchronous>, transform_indices = @transform_4, window_bounds = array<i64: 1, 128>}, {pipeline_mode = #tpu.pipeline_mode<synchronous>, transform_indices = @transform_5, window_bounds = array<i64: 128, 128>}, {pipeline_mode = #tpu.pipeline_mode<synchronous>, transform_indices = @transform_6, window_bounds = array<i64: 1, 128>}, {transform_indices = @transform_7, window_bounds = array<i64: 1, 8, 128>}, {pipeline_mode = #tpu.pipeline_mode<synchronous>, transform_indices = @transform_8, window_bounds = array<i64: 8, 128>}]} {
    %c0_i32 = arith.constant 0 : i32
    %0 = arith.cmpi eq, %arg0, %c0_i32 : i32
    %1 = arith.extui %0 : i1 to i32
    %c0_i32_0 = arith.constant 0 : i32
    %2 = arith.cmpi ne, %1, %c0_i32_0 : i32
    scf.if %2 {
      %c0_22 = arith.constant 0 : index
      %c0_23 = arith.constant 0 : index
      %24 = vector.load %arg2[%c0_22, %c0_23] : memref<8x128xf32, #tpu.memory_space<vmem>>, vector<8x128xf32>
      %c0_24 = arith.constant 0 : index
      %c0_25 = arith.constant 0 : index
      %25 = vector.load %arg9[%c0_24, %c0_25] : memref<8x128xf32, #tpu.memory_space<vmem>>, vector<8x128xf32>
      tpu.vector_store %arg9[%c0_24, %c0_25], %24 {strides = array<i32>} : memref<8x128xf32, #tpu.memory_space<vmem>>, vector<8x128xf32>,
    } else {
    }
    %c0 = arith.constant 0 : index
    %c0_1 = arith.constant 0 : index
    %3 = vector.load %arg3[%c0, %c0_1] : memref<128x128xf32, #tpu.memory_space<vmem>>, vector<128x128xf32>
    %c0_2 = arith.constant 0 : index
    %c0_3 = arith.constant 0 : index
    %4 = vector.load %arg4[%c0_2, %c0_3] : memref<128x128xf32, #tpu.memory_space<vmem>>, vector<128x128xf32>
    %c0_4 = arith.constant 0 : index
    %c0_5 = arith.constant 0 : index
    %5 = vector.load %arg5[%c0_4, %c0_5] : memref<1x128xf32, #tpu.memory_space<vmem>>, vector<1x128xf32>
    %6 = vector.shape_cast %5 : vector<1x128xf32> to vector<1x128xf32>
    %7 = vector.broadcast %6 : vector<1x128xf32> to vector<8x128xf32>
    %c0_6 = arith.constant 0 : index
    %c0_7 = arith.constant 0 : index
    %8 = vector.load %arg9[%c0_6, %c0_7] : memref<8x128xf32, #tpu.memory_space<vmem>>, vector<8x128xf32>
    %c0_8 = arith.constant 0 : index
    %c0_9 = arith.constant 0 : index
    %c0_10 = arith.constant 0 : index
    %9 = vector.load %arg1[%c0_8, %c0_9, %c0_10] : memref<1x8x128xf32, #tpu.memory_space<vmem>>, vector<1x8x128xf32>
    %10 = vector.shape_cast %9 : vector<1x8x128xf32> to vector<8x128xf32>
    %cst = arith.constant dense<0.000000e+00> : vector<8x128xf32>
    %11 = tpu.matmul %10, %3, %cst {dimension_numbers = #tpu.dot_dimension_numbers<[1], [0], [0], [1], [0, 0, 1, 1], [], []>} : vector<8x128xf32>, vector<128x128xf32>, vector<8x128xf32> -> vector<8x128xf32>
    %cst_11 = arith.constant dense<0.000000e+00> : vector<8x128xf32>
    %12 = tpu.matmul %8, %4, %cst_11 {dimension_numbers = #tpu.dot_dimension_numbers<[1], [0], [0], [1], [0, 0, 1, 1], [], []>} : vector<8x128xf32>, vector<128x128xf32>, vector<8x128xf32> -> vector<8x128xf32>
    %13 = arith.addf %11, %12 : vector<8x128xf32>
    %14 = arith.addf %13, %7 : vector<8x128xf32>
    %15 = math.tanh %14 : vector<8x128xf32>
    %c0_12 = arith.constant 0 : index
    %c0_13 = arith.constant 0 : index
    %16 = vector.load %arg9[%c0_12, %c0_13] : memref<8x128xf32, #tpu.memory_space<vmem>>, vector<8x128xf32>
    tpu.vector_store %arg9[%c0_12, %c0_13], %15 {strides = array<i32>} : memref<8x128xf32, #tpu.memory_space<vmem>>, vector<8x128xf32>,
    %c0_14 = arith.constant 0 : index
    %c0_15 = arith.constant 0 : index
    %17 = vector.load %arg6[%c0_14, %c0_15] : memref<128x128xf32, #tpu.memory_space<vmem>>, vector<128x128xf32>
    %cst_16 = arith.constant dense<0.000000e+00> : vector<8x128xf32>
    %18 = tpu.matmul %15, %17, %cst_16 {dimension_numbers = #tpu.dot_dimension_numbers<[1], [0], [0], [1], [0, 0, 1, 1], [], []>} : vector<8x128xf32>, vector<128x128xf32>, vector<8x128xf32> -> vector<8x128xf32>
    %c0_17 = arith.constant 0 : index
    %c0_18 = arith.constant 0 : index
    %19 = vector.load %arg7[%c0_17, %c0_18] : memref<1x128xf32, #tpu.memory_space<vmem>>, vector<1x128xf32>
    %20 = vector.broadcast %19 : vector<1x128xf32> to vector<8x128xf32>
    %21 = arith.addf %18, %20 : vector<8x128xf32>
    %22 = vector.shape_cast %21 : vector<8x128xf32> to vector<1x8x128xf32>
    %c0_19 = arith.constant 0 : index
    %c0_20 = arith.constant 0 : index
    %c0_21 = arith.constant 0 : index
    %23 = vector.load %arg8[%c0_19, %c0_20, %c0_21] : memref<1x8x128xf32, #tpu.memory_space<vmem>>, vector<1x8x128xf32>
    tpu.vector_store %arg8[%c0_19, %c0_20, %c0_21], %22 {strides = array<i32>} : memref<1x8x128xf32, #tpu.memory_space<vmem>>, vector<1x8x128xf32>,
    return
  }
  func.func @transform_0(%arg0: i32) -> (i32, i32, i32) {
    %c0_i32 = arith.constant 0 : i32
    %c0_i32_0 = arith.constant 0 : i32
    %c0_i32_1 = arith.constant 0 : i32
    return %arg0, %c0_i32, %c0_i32_0 : i32, i32, i32
  }
  func.func @transform_1(%arg0: i32) -> (i32, i32) {
    %c0_i32 = arith.constant 0 : i32
    %c0_i32_0 = arith.constant 0 : i32
    %c0_i32_1 = arith.constant 0 : i32
    return %c0_i32, %c0_i32_0 : i32, i32
  }
  func.func @transform_2(%arg0: i32) -> (i32, i32) {
    %c0_i32 = arith.constant 0 : i32
    %c0_i32_0 = arith.constant 0 : i32
    %c0_i32_1 = arith.constant 0 : i32
    return %c0_i32, %c0_i32_0 : i32, i32
  }
  func.func @transform_3(%arg0: i32) -> (i32, i32) {
    %c0_i32 = arith.constant 0 : i32
    %c0_i32_0 = arith.constant 0 : i32
    %c0_i32_1 = arith.constant 0 : i32
    return %c0_i32, %c0_i32_0 : i32, i32
  }
  func.func @transform_4(%arg0: i32) -> (i32, i32) {
    %c0_i32 = arith.constant 0 : i32
    %c0_i32_0 = arith.constant 0 : i32
    %c0_i32_1 = arith.constant 0 : i32
    return %c0_i32, %c0_i32_0 : i32, i32
  }
  func.func @transform_5(%arg0: i32) -> (i32, i32) {
    %c0_i32 = arith.constant 0 : i32
    %c0_i32_0 = arith.constant 0 : i32
    %c0_i32_1 = arith.constant 0 : i32
    return %c0_i32, %c0_i32_0 : i32, i32
  }
  func.func @transform_6(%arg0: i32) -> (i32, i32) {
    %c0_i32 = arith.constant 0 : i32
    %c0_i32_0 = arith.constant 0 : i32
    %c0_i32_1 = arith.constant 0 : i32
    return %c0_i32, %c0_i32_0 : i32, i32
  }
  func.func @transform_7(%arg0: i32) -> (i32, i32, i32) {
    %c0_i32 = arith.constant 0 : i32
    %c0_i32_0 = arith.constant 0 : i32
    %c0_i32_1 = arith.constant 0 : i32
    return %arg0, %c0_i32, %c0_i32_0 : i32, i32, i32
  }
  func.func @transform_8(%arg0: i32) -> (i32, i32) {
    %c0_i32 = arith.constant 0 : i32
    %c0_i32_0 = arith.constant 0 : i32
    %c0_i32_1 = arith.constant 0 : i32
    return %c0_i32, %c0_i32_0 : i32, i32
  }
}

</mosaic_0001>

<llo_original>
// kernel: vanilla_rnn_sequence.1
$region0: #{vanilla_rnn_sequence.1}
  #allocation0 [shape = 'u32[]', space=smem, size = 0x4, offset = 0x4, fixed_abs, tag = 'smem constant byte address 0x4 - core index']
  #allocation1 [shape = 'u32[144,128]{1,0:T(1,128)}', space=vmem, size = 0x12000, scoped, tag = 'internal scratch']
  %s0 = inlined_call_operand.vmem [shape: f32[1,8,128], index: 0, kind: input, shape index: {}]
  %s1 = inlined_call_operand.vmem [shape: f32[8,128], index: 1, kind: input, shape index: {}]
  %s2 = inlined_call_operand.hbm [shape: f32[128,128], index: 2, kind: input, shape index: {}]
  %s3 = inlined_call_operand.hbm [shape: f32[128,128], index: 3, kind: input, shape index: {}]
  %s4 = inlined_call_operand.vmem [shape: f32[1,128], index: 4, kind: input, shape index: {}]
  %s5 = inlined_call_operand.hbm [shape: f32[128,128], index: 5, kind: input, shape index: {}]
  %s6 = inlined_call_operand.vmem [shape: f32[1,128], index: 6, kind: input, shape index: {}]
  %s7 = inlined_call_operand.vmem [shape: f32[1,8,128], index: 7, kind: output, shape index: {0}]
  %s8 = inlined_call_operand.vmem [shape: f32[8,128], index: 8, kind: output, shape index: {1}]
  %9 = xla_tuple %s7, %s8
  %s10 = sld [smem:[#allocation0]]
  $region62: #{vanilla_rnn_sequence.1} parent=0
    _
  %s12 = ssub.s32 1, %s10
  %s13 = scalar_select 0, %s12, %s10
  $region1: #{vanilla_rnn_sequence.1} parent=0
    #allocation2 [shape = 'u8[65536]{0}', space=vmem, size = 0x10000, scoped, tag = 'input window, operand 2, single buffered']
    #allocation3 [shape = 's32[1]{0}', space=sflag, size = 0x4, scoped, tag = 'scoped memory for vanilla_rnn_sequence.1']
    #allocation4 [shape = 'u8[65536]{0}', space=vmem, size = 0x10000, scoped, tag = 'input window, operand 3, single buffered']
    #allocation5 [shape = 's32[1]{0}', space=sflag, size = 0x4, scoped, tag = 'scoped memory for vanilla_rnn_sequence.1']
    #allocation6 [shape = 'u8[65536]{0}', space=vmem, size = 0x10000, scoped, tag = 'input window, operand 5, single buffered']
    %14 = vsyncpa [#allocation3], 0
    %15 = vsyncpa [#allocation5], 0
    // Predicated region
    $region2: #{vanilla_rnn_sequence.1} parent=1 // pred_check
      _
    $region3: #{vanilla_rnn_sequence.1} parent=1 // pred_check_branch
      %17 = sbr.rel (0) target = $region5
    $region4: #{vanilla_rnn_sequence.1} parent=1 // pred_region
      _
    $region5: #{vanilla_rnn_sequence.1} parent=1 // pred_fallthru
      _
    // Predicated region
    $region6: #{vanilla_rnn_sequence.1} parent=1 // pred_check
      _
    $region7: #{vanilla_rnn_sequence.1} parent=1 // pred_check_branch
      %19 = sbr.rel (0) target = $region9
    $region8: #{vanilla_rnn_sequence.1} parent=1 // pred_region
      _
    $region9: #{vanilla_rnn_sequence.1} parent=1 // pred_fallthru
      _
    // Predicated region
    $region10: #{vanilla_rnn_sequence.1} parent=1 // pred_check
      _
    $region11: #{vanilla_rnn_sequence.1} parent=1 // pred_check_branch
      %21 = sbr.rel (0) target = $region13
    $region12: #{vanilla_rnn_sequence.1} parent=1 // pred_region
      %s23 = ssub.s32 2048, 2048
      %24 = vsyncadd [#allocation3], %s23
      %s25 = sshll.u32 [#allocation2], 4
      %s26 = int_to_ptr.vmem [resolvable:$true] %s25
      %31 = dma.hbm_to_vmem [thread:$0]  %s2, 2048, %s26, [#allocation3], 128, 128, 8
    $region13: #{vanilla_rnn_sequence.1} parent=1 // pred_fallthru
      _
    // Predicated region
    $region14: #{vanilla_rnn_sequence.1} parent=1 // pred_check
      _
    $region15: #{vanilla_rnn_sequence.1} parent=1 // pred_check_branch
      %33 = sbr.rel (0) target = $region17
    $region16: #{vanilla_rnn_sequence.1} parent=1 // pred_region
      %s35 = ssub.s32 2048, 2048
      %36 = vsyncadd [#allocation5], %s35
      %s37 = sshll.u32 [#allocation4], 4
      %s38 = int_to_ptr.vmem [resolvable:$true] %s37
      %43 = dma.hbm_to_vmem [thread:$0]  %s3, 2048, %s38, [#allocation5], 128, 128, 8
    $region17: #{vanilla_rnn_sequence.1} parent=1 // pred_fallthru
      _
    // Predicated region
    $region18: #{vanilla_rnn_sequence.1} parent=1 // pred_check
      _
    $region19: #{vanilla_rnn_sequence.1} parent=1 // pred_check_branch
      %45 = sbr.rel (0) target = $region21
    $region20: #{vanilla_rnn_sequence.1} parent=1 // pred_region
      _
    $region21: #{vanilla_rnn_sequence.1} parent=1 // pred_fallthru
      _
    // Predicated region
    $region22: #{vanilla_rnn_sequence.1} parent=1 // pred_check
      _
    $region23: #{vanilla_rnn_sequence.1} parent=1 // pred_check_branch
      %47 = sbr.rel (0) target = $region25
    $region24: #{vanilla_rnn_sequence.1} parent=1 // pred_region
      %s49 = ssub.s32 2048, 2048
      %50 = vsyncadd [#allocation5], %s49
      %s51 = sshll.u32 [#allocation6], 4
      %s52 = int_to_ptr.vmem [resolvable:$true] %s51
      %57 = dma.hbm_to_vmem [thread:$0]  %s5, 2048, %s52, [#allocation5], 128, 128, 8
    $region25: #{vanilla_rnn_sequence.1} parent=1 // pred_fallthru
      _
    // Predicated region
    $region26: #{vanilla_rnn_sequence.1} parent=1 // pred_check
      _
    $region27: #{vanilla_rnn_sequence.1} parent=1 // pred_check_branch
      %59 = sbr.rel (0) target = $region29
    $region28: #{vanilla_rnn_sequence.1} parent=1 // pred_region
      _
    $region29: #{vanilla_rnn_sequence.1} parent=1 // pred_fallthru
      _
    // Predicated region
    $region30: #{vanilla_rnn_sequence.1} parent=1 // pred_check
      _
    $region31: #{vanilla_rnn_sequence.1} parent=1 // pred_check_branch
      %61 = sbr.rel (0) target = $region33
    $region32: #{vanilla_rnn_sequence.1} parent=1 // pred_region
      %62 = dma.done [#allocation3], 2048
    $region33: #{vanilla_rnn_sequence.1} parent=1 // pred_fallthru
      _
    // Predicated region
    $region34: #{vanilla_rnn_sequence.1} parent=1 // pred_check
      _
    $region35: #{vanilla_rnn_sequence.1} parent=1 // pred_check_branch
      %64 = sbr.rel (0) target = $region37
    $region36: #{vanilla_rnn_sequence.1} parent=1 // pred_region
      %65 = dma.done [#allocation5], 2048
    $region37: #{vanilla_rnn_sequence.1} parent=1 // pred_fallthru
      _
    // Predicated region
    $region38: #{vanilla_rnn_sequence.1} parent=1 // pred_check
      _
    $region39: #{vanilla_rnn_sequence.1} parent=1 // pred_check_branch
      %67 = sbr.rel (0) target = $region41
    $region40: #{vanilla_rnn_sequence.1} parent=1 // pred_region
      %68 = dma.done [#allocation5], 2048
    $region41: #{vanilla_rnn_sequence.1} parent=1 // pred_fallthru
      _
    %p69 = scmp.eq.s32.totalorder 0, 0
    // Predicated region
    $region42: #{vanilla_rnn_sequence.1} parent=1 // pred_check
      %p70 = pneg %p69
    $region43: #{vanilla_rnn_sequence.1} parent=1 // pred_check_branch
      %72 = sbr.rel (%p70) target = $region45
    $region44: #{vanilla_rnn_sequence.1} parent=1 // pred_region
      %v73 = vld [vmem:[%s1] sm:$0xff]
      %74 = vst [vmem:[%s8] sm:$0xff] %v73
    $region45: #{vanilla_rnn_sequence.1} parent=1 // pred_fallthru
      _
    %v75 = vld [vmem:[#allocation2] sm:$0xff]
    %v76 = vld [vmem:[#allocation2 + $0x8] sm:$0xff]
    %v77 = vld [vmem:[#allocation2 + $0x10] sm:$0xff]
    %v78 = vld [vmem:[#allocation2 + $0x18] sm:$0xff]
    %v79 = vld [vmem:[#allocation2 + $0x20] sm:$0xff]
    %v80 = vld [vmem:[#allocation2 + $0x28] sm:$0xff]
    %v81 = vld [vmem:[#allocation2 + $0x30] sm:$0xff]
    %v82 = vld [vmem:[#allocation2 + $0x38] sm:$0xff]
    %v83 = vld [vmem:[#allocation2 + $0x40] sm:$0xff]
    %v84 = vld [vmem:[#allocation2 + $0x48] sm:$0xff]
    %v85 = vld [vmem:[#allocation2 + $0x50] sm:$0xff]
    %v86 = vld [vmem:[#allocation2 + $0x58] sm:$0xff]
    %v87 = vld [vmem:[#allocation2 + $0x60] sm:$0xff]
    %v88 = vld [vmem:[#allocation2 + $0x68] sm:$0xff]
    %v89 = vld [vmem:[#allocation2 + $0x70] sm:$0xff]
    %v90 = vld [vmem:[#allocation2 + $0x78] sm:$0xff]
    %v91 = vld [vmem:[#allocation4] sm:$0xff]
    %v92 = vld [vmem:[#allocation4 + $0x8] sm:$0xff]
    %v93 = vld [vmem:[#allocation4 + $0x10] sm:$0xff]
    %v94 = vld [vmem:[#allocation4 + $0x18] sm:$0xff]
    %v95 = vld [vmem:[#allocation4 + $0x20] sm:$0xff]
    %v96 = vld [vmem:[#allocation4 + $0x28] sm:$0xff]
    %v97 = vld [vmem:[#allocation4 + $0x30] sm:$0xff]
    %v98 = vld [vmem:[#allocation4 + $0x38] sm:$0xff]
    %v99 = vld [vmem:[#allocation4 + $0x40] sm:$0xff]
    %v100 = vld [vmem:[#allocation4 + $0x48] sm:$0xff]
    %v101 = vld [vmem:[#allocation4 + $0x50] sm:$0xff]
    %v102 = vld [vmem:[#allocation4 + $0x58] sm:$0xff]
    %v103 = vld [vmem:[#allocation4 + $0x60] sm:$0xff]
    %v104 = vld [vmem:[#allocation4 + $0x68] sm:$0xff]
    %v105 = vld [vmem:[#allocation4 + $0x70] sm:$0xff]
    %v106 = vld [vmem:[#allocation4 + $0x78] sm:$0xff]
    %v107 = vld [vmem:[%s4] sm:$0x1]
    %v109 = vlaneseq
    %v110 = vshrl.u32 %v109, 7
    %v111 = vsub.s32 0, %v110
    %v112 = vrot.slane %v107, %v111
    %v114 = vld [vmem:[%s8] sm:$0xff]
    %v115 = vld [vmem:[%s0] sm:$0xff]
    %116 = vmatprep.subr.mxu0 0.0
    %117 = vmatpush1.msra.mxu0 %v106
    %118 = vmatprep.subr.mxu0 0.0
    %119 = vmatpush1.msra.mxu0 %v105
    %120 = vmatprep.subr.mxu0 0.0
    %121 = vmatpush1.msra.mxu0 %v104
    %122 = vmatprep.subr.mxu0 0.0
    %123 = vmatpush1.msra.mxu0 %v103
    %124 = vmatprep.subr.mxu0 0.0
    %125 = vmatpush1.msra.mxu0 %v102
    %126 = vmatprep.subr.mxu0 0.0
    %127 = vmatpush1.msra.mxu0 %v101
    %128 = vmatprep.subr.mxu0 0.0
    %129 = vmatpush1.msra.mxu0 %v100
    %130 = vmatprep.subr.mxu0 0.0
    %131 = vmatpush1.msra.mxu0 %v99
    %132 = vmatprep.subr.mxu0 0.0
    %133 = vmatpush1.msra.mxu0 %v98
    %134 = vmatprep.subr.mxu0 0.0
    %135 = vmatpush1.msra.mxu0 %v97
    %136 = vmatprep.subr.mxu0 0.0
    %137 = vmatpush1.msra.mxu0 %v96
    %138 = vmatprep.subr.mxu0 0.0
    %139 = vmatpush1.msra.mxu0 %v95
    %140 = vmatprep.subr.mxu0 0.0
    %141 = vmatpush1.msra.mxu0 %v94
    %142 = vmatprep.subr.mxu0 0.0
    %143 = vmatpush1.msra.mxu0 %v93
    %144 = vmatprep.subr.mxu0 0.0
    %145 = vmatpush1.msra.mxu0 %v92
    %146 = vmatprep.subr.mxu0 0.0
    %147 = vmatpush1.msra.mxu0 %v91
    %148 = vmatprep.subr.mxu0 0.0
    %149 = vmatpush2.msra.mxu0 0.0
    %150 = vmatprep.subr.mxu0 0.0
    %151 = vmatpush2.msra.mxu0 0.0
    %152 = vmatprep.subr.mxu0 0.0
    %153 = vmatpush2.msra.mxu0 0.0
    %154 = vmatprep.subr.mxu0 0.0
    %155 = vmatpush2.msra.mxu0 0.0
    %156 = vmatprep.subr.mxu0 0.0
    %157 = vmatpush2.msra.mxu0 0.0
    %158 = vmatprep.subr.mxu0 0.0
    %159 = vmatpush2.msra.mxu0 0.0
    %160 = vmatprep.subr.mxu0 0.0
    %161 = vmatpush2.msra.mxu0 0.0
    %162 = vmatprep.subr.mxu0 0.0
    %163 = vmatpush2.msra.mxu0 0.0
    %164 = vmatprep.subr.mxu0 0.0
    %165 = vmatpush2.msra.mxu0 0.0
    %166 = vmatprep.subr.mxu0 0.0
    %167 = vmatpush2.msra.mxu0 0.0
    %168 = vmatprep.subr.mxu0 0.0
    %169 = vmatpush2.msra.mxu0 0.0
    %170 = vmatprep.subr.mxu0 0.0
    %171 = vmatpush2.msra.mxu0 0.0
    %172 = vmatprep.subr.mxu0 0.0
    %173 = vmatpush2.msra.mxu0 0.0
    %174 = vmatprep.subr.mxu0 0.0
    %175 = vmatpush2.msra.mxu0 0.0
    %176 = vmatprep.subr.mxu0 0.0
    %177 = vmatpush2.msra.mxu0 0.0
    %178 = vmatprep.subr.mxu0 0.0
    %179 = vmatpush2.msra.mxu0 0.0
    %180 = vmatprep.mubr.f32.mxu0 0.0
    %181 = vmatmul.mubr.f32.gmra.mxu0 %v114
    %v182 = vpop.f32.mrf.mxu0
    %v183 = vadd.f32 0.0, %v182
    %v184 = vpop.f32.mrf.mxu0
    %185 = vdwg.mxu0
    %186 = vmatprep.subr.mxu0 0.0
    %187 = vmatpush1.msra.mxu0 %v90
    %188 = vmatprep.subr.mxu0 0.0
    %189 = vmatpush1.msra.mxu0 %v89
    %190 = vmatprep.subr.mxu0 0.0
    %191 = vmatpush1.msra.mxu0 %v88
    %192 = vmatprep.subr.mxu0 0.0
    %193 = vmatpush1.msra.mxu0 %v87
    %194 = vmatprep.subr.mxu0 0.0
    %195 = vmatpush1.msra.mxu0 %v86
    %196 = vmatprep.subr.mxu0 0.0
    %197 = vmatpush1.msra.mxu0 %v85
    %198 = vmatprep.subr.mxu0 0.0
    %199 = vmatpush1.msra.mxu0 %v84
    %200 = vmatprep.subr.mxu0 0.0
    %201 = vmatpush1.msra.mxu0 %v83
    %202 = vmatprep.subr.mxu0 0.0
    %203 = vmatpush1.msra.mxu0 %v82
    %204 = vmatprep.subr.mxu0 0.0
    %205 = vmatpush1.msra.mxu0 %v81
    %206 = vmatprep.subr.mxu0 0.0
    %207 = vmatpush1.msra.mxu0 %v80
    %208 = vmatprep.subr.mxu0 0.0
    %209 = vmatpush1.msra.mxu0 %v79
    %210 = vmatprep.subr.mxu0 0.0
    %211 = vmatpush1.msra.mxu0 %v78
    %212 = vmatprep.subr.mxu0 0.0
    %213 = vmatpush1.msra.mxu0 %v77
    %214 = vmatprep.subr.mxu0 0.0
    %215 = vmatpush1.msra.mxu0 %v76
    %216 = vmatprep.subr.mxu0 0.0
    %217 = vmatpush1.msra.mxu0 %v75
    %218 = vmatprep.subr.mxu0 0.0
    %219 = vmatpush2.msra.mxu0 0.0
    %220 = vmatprep.subr.mxu0 0.0
    %221 = vmatpush2.msra.mxu0 0.0
    %222 = vmatprep.subr.mxu0 0.0
    %223 = vmatpush2.msra.mxu0 0.0
    %224 = vmatprep.subr.mxu0 0.0
    %225 = vmatpush2.msra.mxu0 0.0
    %226 = vmatprep.subr.mxu0 0.0
    %227 = vmatpush2.msra.mxu0 0.0
    %228 = vmatprep.subr.mxu0 0.0
    %229 = vmatpush2.msra.mxu0 0.0
    %230 = vmatprep.subr.mxu0 0.0
    %231 = vmatpush2.msra.mxu0 0.0
    %232 = vmatprep.subr.mxu0 0.0
    %233 = vmatpush2.msra.mxu0 0.0
    %234 = vmatprep.subr.mxu0 0.0
    %235 = vmatpush2.msra.mxu0 0.0
    %236 = vmatprep.subr.mxu0 0.0
    %237 = vmatpush2.msra.mxu0 0.0
    %238 = vmatprep.subr.mxu0 0.0
    %239 = vmatpush2.msra.mxu0 0.0
    %240 = vmatprep.subr.mxu0 0.0
    %241 = vmatpush2.msra.mxu0 0.0
    %242 = vmatprep.subr.mxu0 0.0
    %243 = vmatpush2.msra.mxu0 0.0
    %244 = vmatprep.subr.mxu0 0.0
    %245 = vmatpush2.msra.mxu0 0.0
    %246 = vmatprep.subr.mxu0 0.0
    %247 = vmatpush2.msra.mxu0 0.0
    %248 = vmatprep.subr.mxu0 0.0
    %249 = vmatpush2.msra.mxu0 0.0
    %250 = vmatprep.mubr.f32.mxu0 0.0
    %251 = vmatmul.mubr.f32.gmra.mxu0 %v115
    %v252 = vpop.f32.mrf.mxu0
    %v253 = vadd.f32 %v183, %v252
    %v254 = vpop.f32.mrf.mxu0
    %255 = vdwg.mxu0
    %v256 = vadd.f32 %v253, %v112
    %v257 = vtanh.pop %v256
    %258 = vst [vmem:[%s8] sm:$0xff] %v257
    %v259 = vld [vmem:[#allocation6] sm:$0xff]
    %v260 = vld [vmem:[#allocation6 + $0x8] sm:$0xff]
    %v261 = vld [vmem:[#allocation6 + $0x10] sm:$0xff]
    %v262 = vld [vmem:[#allocation6 + $0x18] sm:$0xff]
    %v263 = vld [vmem:[#allocation6 + $0x20] sm:$0xff]
    %v264 = vld [vmem:[#allocation6 + $0x28] sm:$0xff]
    %v265 = vld [vmem:[#allocation6 + $0x30] sm:$0xff]
    %v266 = vld [vmem:[#allocation6 + $0x38] sm:$0xff]
    %v267 = vld [vmem:[#allocation6 + $0x40] sm:$0xff]
    %v268 = vld [vmem:[#allocation6 + $0x48] sm:$0xff]
    %v269 = vld [vmem:[#allocation6 + $0x50] sm:$0xff]
    %v270 = vld [vmem:[#allocation6 + $0x58] sm:$0xff]
    %v271 = vld [vmem:[#allocation6 + $0x60] sm:$0xff]
    %v272 = vld [vmem:[#allocation6 + $0x68] sm:$0xff]
    %v273 = vld [vmem:[#allocation6 + $0x70] sm:$0xff]
    %v274 = vld [vmem:[#allocation6 + $0x78] sm:$0xff]
    %v275 = vld [vmem:[%s6] sm:$0x1]
    %v277 = vlaneseq
    %v278 = vshrl.u32 %v277, 7
    %v279 = vsub.s32 0, %v278
    %v280 = vrot.slane %v275, %v279
    %282 = vmatprep.subr.mxu0 0.0
    %283 = vmatpush1.msra.mxu0 %v274
    %284 = vmatprep.subr.mxu0 0.0
    %285 = vmatpush1.msra.mxu0 %v273
    %286 = vmatprep.subr.mxu0 0.0
    %287 = vmatpush1.msra.mxu0 %v272
    %288 = vmatprep.subr.mxu0 0.0
    %289 = vmatpush1.msra.mxu0 %v271
    %290 = vmatprep.subr.mxu0 0.0
    %291 = vmatpush1.msra.mxu0 %v270
    %292 = vmatprep.subr.mxu0 0.0
    %293 = vmatpush1.msra.mxu0 %v269
    %294 = vmatprep.subr.mxu0 0.0
    %295 = vmatpush1.msra.mxu0 %v268
    %296 = vmatprep.subr.mxu0 0.0
    %297 = vmatpush1.msra.mxu0 %v267
    %298 = vmatprep.subr.mxu0 0.0
    %299 = vmatpush1.msra.mxu0 %v266
    %300 = vmatprep.subr.mxu0 0.0
    %301 = vmatpush1.msra.mxu0 %v265
    %302 = vmatprep.subr.mxu0 0.0
    %303 = vmatpush1.msra.mxu0 %v264
    %304 = vmatprep.subr.mxu0 0.0
    %305 = vmatpush1.msra.mxu0 %v263
    %306 = vmatprep.subr.mxu0 0.0
    %307 = vmatpush1.msra.mxu0 %v262
    %308 = vmatprep.subr.mxu0 0.0
    %309 = vmatpush1.msra.mxu0 %v261
    %310 = vmatprep.subr.mxu0 0.0
    %311 = vmatpush1.msra.mxu0 %v260
    %312 = vmatprep.subr.mxu0 0.0
    %313 = vmatpush1.msra.mxu0 %v259
    %314 = vmatprep.subr.mxu0 0.0
    %315 = vmatpush2.msra.mxu0 0.0
    %316 = vmatprep.subr.mxu0 0.0
    %317 = vmatpush2.msra.mxu0 0.0
    %318 = vmatprep.subr.mxu0 0.0
    %319 = vmatpush2.msra.mxu0 0.0
    %320 = vmatprep.subr.mxu0 0.0
    %321 = vmatpush2.msra.mxu0 0.0
    %322 = vmatprep.subr.mxu0 0.0
    %323 = vmatpush2.msra.mxu0 0.0
    %324 = vmatprep.subr.mxu0 0.0
    %325 = vmatpush2.msra.mxu0 0.0
    %326 = vmatprep.subr.mxu0 0.0
    %327 = vmatpush2.msra.mxu0 0.0
    %328 = vmatprep.subr.mxu0 0.0
    %329 = vmatpush2.msra.mxu0 0.0
    %330 = vmatprep.subr.mxu0 0.0
    %331 = vmatpush2.msra.mxu0 0.0
    %332 = vmatprep.subr.mxu0 0.0
    %333 = vmatpush2.msra.mxu0 0.0
    %334 = vmatprep.subr.mxu0 0.0
    %335 = vmatpush2.msra.mxu0 0.0
    %336 = vmatprep.subr.mxu0 0.0
    %337 = vmatpush2.msra.mxu0 0.0
    %338 = vmatprep.subr.mxu0 0.0
    %339 = vmatpush2.msra.mxu0 0.0
    %340 = vmatprep.subr.mxu0 0.0
    %341 = vmatpush2.msra.mxu0 0.0
    %342 = vmatprep.subr.mxu0 0.0
    %343 = vmatpush2.msra.mxu0 0.0
    %344 = vmatprep.subr.mxu0 0.0
    %345 = vmatpush2.msra.mxu0 0.0
    %346 = vmatprep.mubr.f32.mxu0 0.0
    %347 = vmatmul.mubr.f32.gmra.mxu0 %v257
    %v348 = vpop.f32.mrf.mxu0
    %v349 = vadd.f32 %v280, %v348
    %v350 = vpop.f32.mrf.mxu0
    %351 = vdwg.mxu0
    %352 = vst [vmem:[%s7] sm:$0xff] %v349
    // Predicated region
    $region46: #{vanilla_rnn_sequence.1} parent=1 // pred_check
      _
    $region47: #{vanilla_rnn_sequence.1} parent=1 // pred_check_branch
      %354 = sbr.rel (0) target = $region49
    $region48: #{vanilla_rnn_sequence.1} parent=1 // pred_region
      _
    $region49: #{vanilla_rnn_sequence.1} parent=1 // pred_fallthru
      _
    // Predicated region
    $region50: #{vanilla_rnn_sequence.1} parent=1 // pred_check
      _
    $region51: #{vanilla_rnn_sequence.1} parent=1 // pred_check_branch
      %356 = sbr.rel (0) target = $region53
    $region52: #{vanilla_rnn_sequence.1} parent=1 // pred_region
      _
    $region53: #{vanilla_rnn_sequence.1} parent=1 // pred_fallthru
      _
    // Predicated region
    $region54: #{vanilla_rnn_sequence.1} parent=1 // pred_check
      _
    $region55: #{vanilla_rnn_sequence.1} parent=1 // pred_check_branch
      %358 = sbr.rel (0) target = $region57
    $region56: #{vanilla_rnn_sequence.1} parent=1 // pred_region
      _
    $region57: #{vanilla_rnn_sequence.1} parent=1 // pred_fallthru
      _
    // Predicated region
    $region58: #{vanilla_rnn_sequence.1} parent=1 // pred_check
      _
    $region59: #{vanilla_rnn_sequence.1} parent=1 // pred_check_branch
      %360 = sbr.rel (0) target = $region61
    $region60: #{vanilla_rnn_sequence.1} parent=1 // pred_region
      _
    $region61: #{vanilla_rnn_sequence.1} parent=1 // pred_fallthru
      _
    %361 = vsyncpa [#allocation3], 1
    %362 = vsyncpa [#allocation5], 1

</llo_original>
